<compile_context>
chip_gen: v7x
topology: tpu7x:2x2x1
jax: 0.10.0
libtpu: 0.0.40
codegen_flags: <defaults>
</compile_context>

<pallas_src>
import functools

import jax
import jax.numpy as jnp
from jax.experimental import pallas as pl
from jax.experimental.pallas import tpu as pltpu


# ----------------------------- Fused Pallas kernel ------------------------- #

def _fused_net_kernel(x_ref, wb_ref, bb_ref, wh_ref, bh_ref, o_ref):
    # Branch (ModuleDict) as ONE block-diagonal matmul:
    #   x row = [x_left | x_right],  wb = [[W_left, 0], [0, W_right]]
    #   => h = [x_left @ W_left | x_right @ W_right]  (the torch.cat(dim=1)).
    h = jnp.dot(x_ref[...], wb_ref[...], preferred_element_type=jnp.float32)
    # Bias + ReLU fused epilogue, strictly f32 on the VPU.
    h = jnp.maximum(h + bb_ref[...], 0.0)
    # Head linear on the already-concatenated activation; head W columns are
    # zero-padded to 128 so the output store is lane-dense (no masked vst).
    o = jnp.dot(h, wh_ref[...], preferred_element_type=jnp.float32) + bh_ref[...]
    o_ref[...] = o.astype(o_ref.dtype)


def _round_up(n, m):
    return ((n + m - 1) // m) * m


@functools.partial(jax.jit, static_argnames=("num_classes", "tb"))
def fused_forward(x, branch_w, branch_b, head_w, head_b, *, num_classes, tb=256):
    """Single-kernel equivalent of NeuralNetwork.forward for this layer stack.

    x: (2, B, F) float32
    returns: (B, num_classes) float32
    """
    two, B, F = x.shape
    # (2, B, F) -> (B, 2F): per-row features of both chunks concatenated, which
    # matches the block-diagonal branch weight packing (layout plumbing only).
    x2 = jnp.transpose(x, (1, 0, 2)).reshape(B, two * F)

    H = branch_w.shape[1]          # 32 (= H1 + H2)
    C_pad = head_w.shape[1]        # 128 (lane-dense padded head output)

    # Batch tile: multiple of 8 sublanes, capped so x/out tiles stay tiny even
    # under v7x's smaller VMEM; weights are resident via constant index_maps.
    TB = min(tb, _round_up(B, 8))
    Bp = _round_up(B, TB)
    if Bp != B:
        x2 = jnp.pad(x2, ((0, Bp - B), (0, 0)))

    out = pl.pallas_call(
        _fused_net_kernel,
        out_shape=jax.ShapeDtypeStruct((Bp, C_pad), x.dtype),
        grid=(Bp // TB,),
        in_specs=[
            pl.BlockSpec((TB, two * F), lambda i: (i, 0)),   # x tile (pipelined)
            pl.BlockSpec((two * F, H), lambda i: (0, 0)),    # branch W (resident)
            pl.BlockSpec((1, H), lambda i: (0, 0)),          # branch bias
            pl.BlockSpec((H, C_pad), lambda i: (0, 0)),      # head W (resident)
            pl.BlockSpec((1, C_pad), lambda i: (0, 0)),      # head bias
        ],
        out_specs=pl.BlockSpec((TB, C_pad), lambda i: (i, 0)),
        compiler_params=pltpu.CompilerParams(
            dimension_semantics=("parallel",),   # megacore sharding on v7x
        ),
    )(x2, branch_w, branch_b, head_w, head_b)

    return out[:B, :num_classes]


# ----------------------------- Param packing -------------------------------- #

def make_params():
    key = jax.random.PRNGKey(0)
    k1, k2, k3, k4, k5, k6 = jax.random.split(key, 6)
    F, H1, H2, C = 32, 16, 16, 10
    return {
        "left_w":  jax.random.normal(k1, (F, H1), jnp.float32) * 0.1,
        "left_b":  jax.random.normal(k2, (1, H1), jnp.float32) * 0.1,
        "right_w": jax.random.normal(k3, (F, H2), jnp.float32) * 0.1,
        "right_b": jax.random.normal(k4, (1, H2), jnp.float32) * 0.1,
        "head_w":  jax.random.normal(k5, (H1 + H2, C), jnp.float32) * 0.1,
        "head_b":  jax.random.normal(k6, (1, C), jnp.float32) * 0.1,
    }


def pack_params(raw, *, lane_pad=128):
    """Pack per-layer params into the 4 dense arrays the kernel consumes."""
    F, H1 = raw["left_w"].shape
    _, H2 = raw["right_w"].shape
    C = raw["head_w"].shape[1]
    H = H1 + H2

    # Block-diagonal branch weight: one matmul replaces both branch linears and
    # the torch.cat(dim=1).
    branch_w = jnp.zeros((2 * F, H), jnp.float32)
    branch_w = branch_w.at[:F, :H1].set(raw["left_w"])
    branch_w = branch_w.at[F:, H1:].set(raw["right_w"])
    branch_b = jnp.concatenate([raw["left_b"], raw["right_b"]], axis=1)

    # Head weight/bias zero-padded along the output dim to a full 128-lane store.
    C_pad = _round_up(max(C, lane_pad), lane_pad)
    head_w = jnp.zeros((H, C_pad), jnp.float32).at[:, :C].set(raw["head_w"])
    head_b = jnp.zeros((1, C_pad), jnp.float32).at[:, :C].set(raw["head_b"])

    packed = {
        "branch_w": branch_w,
        "branch_b": branch_b,
        "head_w": head_w,
        "head_b": head_b,
    }
    return packed, C


# ----------------------------- Glue classes --------------------------------- #

class InferenceResult:
    def __init__(self, result):
        self.tensor = result
        self.predicted = jnp.argmax(jnp.squeeze(result))


# TODO(synk): save/load/plot_loss/device from the PyTorch module are
# host-side/torch-specific utilities with no Pallas equivalent; omitted.


# --------------------------------- Driver ----------------------------------- #

if __name__ == "__main__":
    B, F = 8, 32
    raw = make_params()
    packed, C = pack_params(raw)

    x = jax.random.normal(jax.random.PRNGKey(42), (2, B, F), jnp.float32)

    out = fused_forward(
        x,
        packed["branch_w"], packed["branch_b"],
        packed["head_w"], packed["head_b"],
        num_classes=C,
    )
    out = jax.block_until_ready(out)

    # Reference check in plain JAX (same math as NeuralNetwork.forward).
    left_ref = x[0] @ raw["left_w"] + raw["left_b"]
    right_ref = x[1] @ raw["right_w"] + raw["right_b"]
    ref = jnp.maximum(jnp.concatenate([left_ref, right_ref], axis=1), 0.0)
    ref = ref @ raw["head_w"] + raw["head_b"]

    assert out.shape == (B, C), out.shape
    assert jnp.allclose(out, ref, atol=1e-5, rtol=1e-5), "mismatch vs reference"

    # InferenceResult path (glue only).
    res = InferenceResult(out[:1])
    _ = jax.block_until_ready(res.predicted)

    print("KERNEL_OK")
</pallas_src>

<mosaic_0001>
module attributes {stable_mosaic.version = 11 : i64} {
  func.func @_fused_net_kernel(%arg0: i32, %arg1: memref<8x64xf32, #tpu.memory_space<vmem>>, %arg2: memref<64x32xf32, #tpu.memory_space<vmem>>, %arg3: memref<1x32xf32, #tpu.memory_space<vmem>>, %arg4: memref<32x128xf32, #tpu.memory_space<vmem>>, %arg5: memref<1x128xf32, #tpu.memory_space<vmem>>, %arg6: memref<8x128xf32, #tpu.memory_space<vmem>>) attributes {dimension_semantics = [#tpu.dimension_semantics<parallel>], iteration_bounds = array<i64: 1>, scalar_prefetch = 0 : i64, scratch_operands = 0 : i64, tpu.core_type = #tpu.core_type<tc>, window_params = [{transform_indices = @transform_0, window_bounds = array<i64: 8, 64>}, {pipeline_mode = #tpu.pipeline_mode<synchronous>, transform_indices = @transform_1, window_bounds = array<i64: 64, 32>}, {pipeline_mode = #tpu.pipeline_mode<synchronous>, transform_indices = @transform_2, window_bounds = array<i64: 1, 32>}, {pipeline_mode = #tpu.pipeline_mode<synchronous>, transform_indices = @transform_3, window_bounds = array<i64: 32, 128>}, {pipeline_mode = #tpu.pipeline_mode<synchronous>, transform_indices = @transform_4, window_bounds = array<i64: 1, 128>}, {transform_indices = @transform_5, window_bounds = array<i64: 8, 128>}]} {
    %c0 = arith.constant 0 : index
    %c0_0 = arith.constant 0 : index
    %0 = vector.load %arg1[%c0, %c0_0] : memref<8x64xf32, #tpu.memory_space<vmem>>, vector<8x64xf32>
    %c0_1 = arith.constant 0 : index
    %c0_2 = arith.constant 0 : index
    %1 = vector.load %arg2[%c0_1, %c0_2] : memref<64x32xf32, #tpu.memory_space<vmem>>, vector<64x32xf32>
    %cst = arith.constant dense<0.000000e+00> : vector<8x32xf32>
    %2 = tpu.matmul %0, %1, %cst {dimension_numbers = #tpu.dot_dimension_numbers<[1], [0], [0], [1], [0, 0, 1, 1], [], []>} : vector<8x64xf32>, vector<64x32xf32>, vector<8x32xf32> -> vector<8x32xf32>
    %c0_3 = arith.constant 0 : index
    %c0_4 = arith.constant 0 : index
    %3 = vector.load %arg3[%c0_3, %c0_4] : memref<1x32xf32, #tpu.memory_space<vmem>>, vector<1x32xf32>
    %4 = vector.broadcast %3 : vector<1x32xf32> to vector<8x32xf32>
    %5 = arith.addf %2, %4 : vector<8x32xf32>
    %cst_5 = arith.constant 0.000000e+00 : f32
    %6 = vector.broadcast %cst_5 : f32 to vector<8x32xf32>
    %7 = arith.maximumf %5, %6 : vector<8x32xf32>
    %c0_6 = arith.constant 0 : index
    %c0_7 = arith.constant 0 : index
    %8 = vector.load %arg4[%c0_6, %c0_7] : memref<32x128xf32, #tpu.memory_space<vmem>>, vector<32x128xf32>
    %cst_8 = arith.constant dense<0.000000e+00> : vector<8x128xf32>
    %9 = tpu.matmul %7, %8, %cst_8 {dimension_numbers = #tpu.dot_dimension_numbers<[1], [0], [0], [1], [0, 0, 1, 1], [], []>} : vector<8x32xf32>, vector<32x128xf32>, vector<8x128xf32> -> vector<8x128xf32>
    %c0_9 = arith.constant 0 : index
    %c0_10 = arith.constant 0 : index
    %10 = vector.load %arg5[%c0_9, %c0_10] : memref<1x128xf32, #tpu.memory_space<vmem>>, vector<1x128xf32>
    %11 = vector.broadcast %10 : vector<1x128xf32> to vector<8x128xf32>
    %12 = arith.addf %9, %11 : vector<8x128xf32>
    %c0_11 = arith.constant 0 : index
    %c0_12 = arith.constant 0 : index
    %13 = vector.load %arg6[%c0_11, %c0_12] : memref<8x128xf32, #tpu.memory_space<vmem>>, vector<8x128xf32>
    tpu.vector_store %arg6[%c0_11, %c0_12], %12 {strides = array<i32>} : memref<8x128xf32, #tpu.memory_space<vmem>>, vector<8x128xf32>,
    return
  }
  func.func @transform_0(%arg0: i32) -> (i32, i32) {
    %c0_i32 = arith.constant 0 : i32
    %c0_i32_0 = arith.constant 0 : i32
    return %arg0, %c0_i32 : i32, i32
  }
  func.func @transform_1(%arg0: i32) -> (i32, i32) {
    %c0_i32 = arith.constant 0 : i32
    %c0_i32_0 = arith.constant 0 : i32
    %c0_i32_1 = arith.constant 0 : i32
    return %c0_i32, %c0_i32_0 : i32, i32
  }
  func.func @transform_2(%arg0: i32) -> (i32, i32) {
    %c0_i32 = arith.constant 0 : i32
    %c0_i32_0 = arith.constant 0 : i32
    %c0_i32_1 = arith.constant 0 : i32
    return %c0_i32, %c0_i32_0 : i32, i32
  }
  func.func @transform_3(%arg0: i32) -> (i32, i32) {
    %c0_i32 = arith.constant 0 : i32
    %c0_i32_0 = arith.constant 0 : i32
    %c0_i32_1 = arith.constant 0 : i32
    return %c0_i32, %c0_i32_0 : i32, i32
  }
  func.func @transform_4(%arg0: i32) -> (i32, i32) {
    %c0_i32 = arith.constant 0 : i32
    %c0_i32_0 = arith.constant 0 : i32
    %c0_i32_1 = arith.constant 0 : i32
    return %c0_i32, %c0_i32_0 : i32, i32
  }
  func.func @transform_5(%arg0: i32) -> (i32, i32) {
    %c0_i32 = arith.constant 0 : i32
    %c0_i32_0 = arith.constant 0 : i32
    return %arg0, %c0_i32 : i32, i32
  }
}

</mosaic_0001>

<llo_original>
// kernel: fused_forward.1
$region0: #{fused_forward.1}
  #allocation0 [shape = 'u32[]', space=smem, size = 0x4, offset = 0x4, fixed_abs, tag = 'smem constant byte address 0x4 - core index']
  #allocation1 [shape = 'u32[144,128]{1,0:T(1,128)}', space=vmem, size = 0x12000, scoped, tag = 'internal scratch']
  %s0 = inlined_call_operand.vmem [shape: f32[8,64], index: 0, kind: input, shape index: {}]
  %s1 = inlined_call_operand.vmem [shape: f32[64,32], index: 1, kind: input, shape index: {}]
  %s2 = inlined_call_operand.vmem [shape: f32[1,32], index: 2, kind: input, shape index: {}]
  %s3 = inlined_call_operand.vmem [shape: f32[32,128], index: 3, kind: input, shape index: {}]
  %s4 = inlined_call_operand.vmem [shape: f32[1,128], index: 4, kind: input, shape index: {}]
  %s5 = inlined_call_operand.hbm [shape: f32[8,128], index: 5, kind: output, shape index: {}]
  %s6 = sld [smem:[#allocation0]]
  $region30: #{fused_forward.1} parent=0
    _
  %s8 = ssub.s32 1, %s6
  %s9 = scalar_select 0, %s8, %s6
  $region1: #{fused_forward.1} parent=0
    #allocation2 [shape = 'u8[4096]{0}', space=vmem, size = 0x1000, scoped, tag = 'output window, operand 0, single buffered']
    #allocation3 [shape = 's32[1]{0}', space=sflag, size = 0x4, scoped, tag = 'scoped memory for fused_forward.1']
    %10 = vsyncpa [#allocation3], 0
    // Predicated region
    $region2: #{fused_forward.1} parent=1 // pred_check
      _
    $region3: #{fused_forward.1} parent=1 // pred_check_branch
      %12 = sbr.rel (0) target = $region5
    $region4: #{fused_forward.1} parent=1 // pred_region
      _
    $region5: #{fused_forward.1} parent=1 // pred_fallthru
      _
    // Predicated region
    $region6: #{fused_forward.1} parent=1 // pred_check
      _
    $region7: #{fused_forward.1} parent=1 // pred_check_branch
      %14 = sbr.rel (0) target = $region9
    $region8: #{fused_forward.1} parent=1 // pred_region
      _
    $region9: #{fused_forward.1} parent=1 // pred_fallthru
      _
    // Predicated region
    $region10: #{fused_forward.1} parent=1 // pred_check
      _
    $region11: #{fused_forward.1} parent=1 // pred_check_branch
      %16 = sbr.rel (0) target = $region13
    $region12: #{fused_forward.1} parent=1 // pred_region
      _
    $region13: #{fused_forward.1} parent=1 // pred_fallthru
      _
    // Predicated region
    $region14: #{fused_forward.1} parent=1 // pred_check
      _
    $region15: #{fused_forward.1} parent=1 // pred_check_branch
      %18 = sbr.rel (0) target = $region17
    $region16: #{fused_forward.1} parent=1 // pred_region
      _
    $region17: #{fused_forward.1} parent=1 // pred_fallthru
      _
    // Predicated region
    $region18: #{fused_forward.1} parent=1 // pred_check
      _
    $region19: #{fused_forward.1} parent=1 // pred_check_branch
      %20 = sbr.rel (0) target = $region21
    $region20: #{fused_forward.1} parent=1 // pred_region
      _
    $region21: #{fused_forward.1} parent=1 // pred_fallthru
      _
    %v21 = vld [vmem:[%s0] sm:$0xff]
    %v22 = vld [vmem:[%s1] sm:$0xff]
    %v23 = vld [vmem:[%s1 + $0x8] sm:$0xff]
    %v24 = vld [vmem:[%s1 + $0x10] sm:$0xff]
    %v25 = vld [vmem:[%s1 + $0x18] sm:$0xff]
    %v26 = vld [vmem:[%s1 + $0x20] sm:$0xff]
    %v27 = vld [vmem:[%s1 + $0x28] sm:$0xff]
    %v28 = vld [vmem:[%s1 + $0x30] sm:$0xff]
    %v29 = vld [vmem:[%s1 + $0x38] sm:$0xff]
    %v30 = vld [vmem:[%s2] sm:$0x1]
    %v32 = vlaneseq
    %v33 = vshrl.u32 %v32, 7
    %v34 = vsub.s32 0, %v33
    %v35 = vrot.slane %v30, %v34
    %vm37 = vcmask 523264
    %v39 = vsel %vm37, %v21, 0
    %41 = vmatprep.subr.mxu0 0.0
    %42 = vmatpush1.msra.mxu0 %v22
    %43 = vmatprep.subr.mxu0 0.0
    %44 = vmatpush1.msra.mxu0 %v23
    %45 = vmatprep.subr.mxu0 0.0
    %46 = vmatpush1.msra.mxu0 %v24
    %47 = vmatprep.subr.mxu0 0.0
    %48 = vmatpush1.msra.mxu0 %v25
    %49 = vmatprep.subr.mxu0 0.0
    %50 = vmatpush1.msra.mxu0 %v26
    %51 = vmatprep.subr.mxu0 0.0
    %52 = vmatpush1.msra.mxu0 %v27
    %53 = vmatprep.subr.mxu0 0.0
    %54 = vmatpush1.msra.mxu0 %v28
    %55 = vmatprep.subr.mxu0 0.0
    %56 = vmatpush1.msra.mxu0 %v29
    %57 = vmatprep.subr.mxu0 0.0
    %58 = vmatpush1.msra.mxu0 0.0
    %59 = vmatprep.subr.mxu0 0.0
    %60 = vmatpush1.msra.mxu0 0.0
    %61 = vmatprep.subr.mxu0 0.0
    %62 = vmatpush1.msra.mxu0 0.0
    %63 = vmatprep.subr.mxu0 0.0
    %64 = vmatpush1.msra.mxu0 0.0
    %65 = vmatprep.subr.mxu0 0.0
    %66 = vmatpush1.msra.mxu0 0.0
    %67 = vmatprep.subr.mxu0 0.0
    %68 = vmatpush1.msra.mxu0 0.0
    %69 = vmatprep.subr.mxu0 0.0
    %70 = vmatpush1.msra.mxu0 0.0
    %71 = vmatprep.subr.mxu0 0.0
    %72 = vmatpush1.msra.mxu0 0.0
    %73 = vmatprep.subr.mxu0 0.0
    %74 = vmatpush1.msra.mxu0 0.0
    %75 = vmatprep.subr.mxu0 0.0
    %76 = vmatpush1.msra.mxu0 0.0
    %77 = vmatprep.subr.mxu0 0.0
    %78 = vmatpush1.msra.mxu0 0.0
    %79 = vmatprep.subr.mxu0 0.0
    %80 = vmatpush1.msra.mxu0 0.0
    %81 = vmatprep.subr.mxu0 0.0
    %82 = vmatpush1.msra.mxu0 0.0
    %83 = vmatprep.subr.mxu0 0.0
    %84 = vmatpush1.msra.mxu0 0.0
    %85 = vmatprep.subr.mxu0 0.0
    %86 = vmatpush1.msra.mxu0 0.0
    %87 = vmatprep.subr.mxu0 0.0
    %88 = vmatpush1.msra.mxu0 0.0
    %89 = vmatprep.subr.mxu0 0.0
    %90 = vmatpush1.msra.mxu0 0.0
    %91 = vmatprep.subr.mxu0 0.0
    %92 = vmatpush1.msra.mxu0 0.0
    %93 = vmatprep.subr.mxu0 0.0
    %94 = vmatpush1.msra.mxu0 0.0
    %95 = vmatprep.subr.mxu0 0.0
    %96 = vmatpush1.msra.mxu0 0.0
    %97 = vmatprep.subr.mxu0 0.0
    %98 = vmatpush1.msra.mxu0 0.0
    %99 = vmatprep.subr.mxu0 0.0
    %100 = vmatpush1.msra.mxu0 0.0
    %101 = vmatprep.subr.mxu0 0.0
    %102 = vmatpush1.msra.mxu0 0.0
    %103 = vmatprep.subr.mxu0 0.0
    %104 = vmatpush1.msra.mxu0 0.0
    %105 = vmatprep.mubr.f32.mxu0 0.0
    %106 = vmatmul.mubr.f32.gmra.mrb[0].mxu0 %v39
    %v107 = vpop.f32.mrb[0].mxu0
    %v108 = vadd.f32 %v35, %v107
    %v109 = vpop.f32.mrb[0].mxu0
    %110 = vdwg.mxu0
    %v111 = vmax.f32 %v108, 0.0
    %v112 = vld [vmem:[%s3] sm:$0xff]
    %v113 = vld [vmem:[%s3 + $0x8] sm:$0xff]
    %v114 = vld [vmem:[%s3 + $0x10] sm:$0xff]
    %v115 = vld [vmem:[%s3 + $0x18] sm:$0xff]
    %v116 = vld [vmem:[%s4] sm:$0x1]
    %v118 = vlaneseq
    %v119 = vshrl.u32 %v118, 7
    %v120 = vsub.s32 0, %v119
    %v121 = vrot.slane %v116, %v120
    %vm123 = vcmask 261120
    %v125 = vsel %vm123, %v111, 0
    %127 = vmatprep.subr.mxu0 0.0
    %128 = vmatpush1.msra.mxu0 %v112
    %129 = vmatprep.subr.mxu0 0.0
    %130 = vmatpush1.msra.mxu0 %v113
    %131 = vmatprep.subr.mxu0 0.0
    %132 = vmatpush1.msra.mxu0 %v114
    %133 = vmatprep.subr.mxu0 0.0
    %134 = vmatpush1.msra.mxu0 %v115
    %135 = vmatprep.subr.mxu0 0.0
    %136 = vmatpush1.msra.mxu0 0.0
    %137 = vmatprep.subr.mxu0 0.0
    %138 = vmatpush1.msra.mxu0 0.0
    %139 = vmatprep.subr.mxu0 0.0
    %140 = vmatpush1.msra.mxu0 0.0
    %141 = vmatprep.subr.mxu0 0.0
    %142 = vmatpush1.msra.mxu0 0.0
    %143 = vmatprep.subr.mxu0 0.0
    %144 = vmatpush1.msra.mxu0 0.0
    %145 = vmatprep.subr.mxu0 0.0
    %146 = vmatpush1.msra.mxu0 0.0
    %147 = vmatprep.subr.mxu0 0.0
    %148 = vmatpush1.msra.mxu0 0.0
    %149 = vmatprep.subr.mxu0 0.0
    %150 = vmatpush1.msra.mxu0 0.0
    %151 = vmatprep.subr.mxu0 0.0
    %152 = vmatpush1.msra.mxu0 0.0
    %153 = vmatprep.subr.mxu0 0.0
    %154 = vmatpush1.msra.mxu0 0.0
    %155 = vmatprep.subr.mxu0 0.0
    %156 = vmatpush1.msra.mxu0 0.0
    %157 = vmatprep.subr.mxu0 0.0
    %158 = vmatpush1.msra.mxu0 0.0
    %159 = vmatprep.subr.mxu0 0.0
    %160 = vmatpush1.msra.mxu0 0.0
    %161 = vmatprep.subr.mxu0 0.0
    %162 = vmatpush1.msra.mxu0 0.0
    %163 = vmatprep.subr.mxu0 0.0
    %164 = vmatpush1.msra.mxu0 0.0
    %165 = vmatprep.subr.mxu0 0.0
    %166 = vmatpush1.msra.mxu0 0.0
    %167 = vmatprep.subr.mxu0 0.0
    %168 = vmatpush1.msra.mxu0 0.0
    %169 = vmatprep.subr.mxu0 0.0
    %170 = vmatpush1.msra.mxu0 0.0
    %171 = vmatprep.subr.mxu0 0.0
    %172 = vmatpush1.msra.mxu0 0.0
    %173 = vmatprep.subr.mxu0 0.0
    %174 = vmatpush1.msra.mxu0 0.0
    %175 = vmatprep.subr.mxu0 0.0
    %176 = vmatpush1.msra.mxu0 0.0
    %177 = vmatprep.subr.mxu0 0.0
    %178 = vmatpush1.msra.mxu0 0.0
    %179 = vmatprep.subr.mxu0 0.0
    %180 = vmatpush1.msra.mxu0 0.0
    %181 = vmatprep.subr.mxu0 0.0
    %182 = vmatpush1.msra.mxu0 0.0
    %183 = vmatprep.subr.mxu0 0.0
    %184 = vmatpush1.msra.mxu0 0.0
    %185 = vmatprep.subr.mxu0 0.0
    %186 = vmatpush1.msra.mxu0 0.0
    %187 = vmatprep.subr.mxu0 0.0
    %188 = vmatpush1.msra.mxu0 0.0
    %189 = vmatprep.subr.mxu0 0.0
    %190 = vmatpush1.msra.mxu0 0.0
    %191 = vmatprep.mubr.f32.mxu0 0.0
    %192 = vmatmul.mubr.f32.gmra.mrb[0].mxu0 %v125
    %v193 = vpop.f32.mrb[0].mxu0
    %v194 = vadd.f32 %v121, %v193
    %v195 = vpop.f32.mrb[0].mxu0
    %196 = vdwg.mxu0
    %197 = vst [vmem:[#allocation2] sm:$0xff] %v194
    // Predicated region
    $region22: #{fused_forward.1} parent=1 // pred_check
      _
    $region23: #{fused_forward.1} parent=1 // pred_check_branch
      %199 = sbr.rel (0) target = $region25
    $region24: #{fused_forward.1} parent=1 // pred_region
      %s201 = ssub.s32 128, 128
      %202 = vsyncadd [#allocation3], %s201
      %s204 = sshll.u32 [#allocation2], 4
      %s205 = int_to_ptr.vmem [resolvable:$true] %s204
      %207 = dma.vmem_to_hbm [thread:$0]  %s205, 128, %s5, [#allocation3]
    $region25: #{fused_forward.1} parent=1 // pred_fallthru
      _
    // Predicated region
    $region26: #{fused_forward.1} parent=1 // pred_check
      _
    $region27: #{fused_forward.1} parent=1 // pred_check_branch
      %209 = sbr.rel (0) target = $region29
    $region28: #{fused_forward.1} parent=1 // pred_region
      %210 = dma.done [#allocation3], 128
    $region29: #{fused_forward.1} parent=1 // pred_fallthru
      _
    %211 = vsyncpa [#allocation3], 1

</llo_original>
